<compile_context>
chip_gen: v7x
topology: tpu7x:2x2x1
jax: 0.10.0
libtpu: 0.0.40
codegen_flags: <defaults>
</compile_context>

<pallas_src>
import functools

import numpy as np

import jax
import jax.numpy as jnp
from jax.experimental import pallas as pl
from jax.experimental.pallas import tpu as pltpu


def _conv_bn_lrelu_kernel(x_ref, t_ref, b_ref, o_ref, *, n, hp, oh, kh, stride):
    # x_ref: (N*HP, WP*C_in)        f32  zero-padded input rows, (W, C_in) on lanes
    # t_ref: (KH, WP*C_in, OW*C_out) bf16 block-Toeplitz conv weight (BN scale folded)
    # b_ref: (1, OW*C_out)          f32  fused BatchNorm bias, tiled over OW
    # o_ref: (N*OH, OW*C_out)       f32  lane-packed output rows
    acc = jnp.zeros(o_ref.shape, jnp.float32)
    for i in range(kh):                       # static unroll over kernel rows
        rows = []
        for img in range(n):                  # static unroll over (small) batch
            start = img * hp + i
            if stride == 1:
                rows.append(x_ref[start:start + oh, :])
            else:
                rows.append(x_ref[pl.ds(start, oh, stride), :])
        xi = rows[0] if n == 1 else jnp.concatenate(rows, axis=0)   # (N*OH, K)
        acc = acc + jnp.dot(xi.astype(jnp.bfloat16), t_ref[i],
                            preferred_element_type=jnp.float32)
    y = acc + b_ref[...]                               # fused BatchNorm (eval mode)
    o_ref[...] = jnp.where(y > 0.0, y, 0.01 * y)       # LeakyReLU(0.01)


@functools.partial(jax.jit,
                   static_argnames=("kernel_size", "stride", "padding", "out_layout"))
def conv_bn_lrelu(x, weight, gamma, beta, running_mean, running_var,
                  kernel_size, stride, padding, eps=1e-5, out_layout="NCHW"):
    """x: (N, C_in, H, W) NCHW.  weight: (C_out, C_in, KH, KW).  Returns NCHW
    (or NHWC if out_layout == "NHWC")."""
    n, c_in, h, w = x.shape
    c_out = weight.shape[0]
    kh = kw = kernel_size
    h_pad, w_pad = h + 2 * padding, w + 2 * padding
    out_h = (h_pad - kh) // stride + 1
    out_w = (w_pad - kw) // stride + 1
    kx = w_pad * c_in                 # contraction width per kernel row
    ln = out_w * c_out                # output lane width (16*8 = 128 here)
    m = n * out_h                     # output sublane rows

    # NCHW -> NHWC, spatial zero-pad, flatten (W, C_in) onto the lane axis.
    xp = jnp.pad(jnp.transpose(x, (0, 2, 3, 1)),
                 ((0, 0), (padding, padding), (padding, padding), (0, 0)))
    xrows = xp.reshape(n * h_pad, kx).astype(jnp.float32)          # (N*HP, KX)

    # Fold BatchNorm (eval mode) into a per-channel scale/bias.
    scale = gamma / jnp.sqrt(running_var + eps)                    # (C_out,)
    bias = beta - running_mean * scale                             # (C_out,)

    # Block-Toeplitz weight: T[i, p*C_in+ci, o*C_out+co] = W_s[i, p - o*stride, ci, co]
    # (zero outside the kernel support).  Built once at trace time; the kw
    # dimension lives entirely inside this matrix, so the kernel only needs
    # KH shifted-row matmuls.
    w_s = (weight * scale[:, None, None, None]).transpose(2, 3, 1, 0)  # (KH,KW,Cin,Cout)
    sel = np.zeros((kw, w_pad, out_w), np.float32)
    for j in range(kw):
        for o in range(out_w):
            p = o * stride + j
            if 0 <= p < w_pad:
                sel[j, p, o] = 1.0
    t = jnp.einsum("jpo,ijcd->ipcod", jnp.asarray(sel), w_s)       # (KH,WP,Cin,OW,Cout)
    t = t.reshape(kh, kx, ln)

    bias_lane = jnp.tile(bias, out_w).reshape(1, ln)               # lane index = ow*C_out+co

    kernel = functools.partial(_conv_bn_lrelu_kernel,
                               n=n, hp=h_pad, oh=out_h, kh=kh, stride=stride)

    # Real (unpadded) cost: true conv MACs and actual bytes moved.
    cost = pl.CostEstimate(
        flops=2 * n * out_h * out_w * c_in * kh * kw * c_out,
        transcendentals=0,
        bytes_accessed=(xrows.size * 4        # f32 padded input rows
                        + t.size * 2          # bf16 Toeplitz weights
                        + bias_lane.size * 4  # f32 fused bias
                        + m * ln * 4))        # f32 output

    out = pl.pallas_call(
        kernel,
        out_shape=jax.ShapeDtypeStruct((m, ln), jnp.float32),
        grid_spec=pltpu.PrefetchScalarGridSpec(
            num_scalar_prefetch=0,
            grid=(1,),                                     # single step: latency-bound
            in_specs=[
                pl.BlockSpec((n * h_pad, kx), lambda i: (0, 0)),
                pl.BlockSpec((kh, kx, ln), lambda i: (0, 0, 0)),
                pl.BlockSpec((1, ln), lambda i: (0, 0)),
            ],
            out_specs=pl.BlockSpec((m, ln), lambda i: (0, 0)),
        ),
        compiler_params=pltpu.CompilerParams(
            dimension_semantics=("arbitrary",)),
        cost_estimate=cost,
    )(xrows, t.astype(jnp.bfloat16), bias_lane.astype(jnp.float32))

    out = out.reshape(n, out_h, out_w, c_out)              # NHWC
    if out_layout == "NHWC":
        return out.astype(x.dtype)
    return out.transpose(0, 3, 1, 2).astype(x.dtype)       # NCHW (module layout)


if __name__ == "__main__":
    # Module config: Conv(in_planes=4, out_planes=8, kernel_size=3, stride=1, padding=1)
    in_planes, out_planes, ksize, stride, padding = 4, 8, 3, 1, 1
    N, H, W = 2, 16, 16

    key = jax.random.PRNGKey(0)
    k_x, k_w = jax.random.split(key)
    x = jax.random.normal(k_x, (N, in_planes, H, W), dtype=jnp.float32)
    weight = jax.random.normal(
        k_w, (out_planes, in_planes, ksize, ksize), dtype=jnp.float32) * 0.1

    # Deterministic BatchNorm parameters (eval-mode statistics).
    gamma = jnp.linspace(0.5, 1.5, out_planes, dtype=jnp.float32)
    beta = jnp.linspace(-0.2, 0.2, out_planes, dtype=jnp.float32)
    running_mean = jnp.linspace(-0.1, 0.1, out_planes, dtype=jnp.float32)
    running_var = jnp.linspace(0.5, 2.0, out_planes, dtype=jnp.float32)

    y = conv_bn_lrelu(x, weight, gamma, beta, running_mean, running_var,
                      kernel_size=ksize, stride=stride, padding=padding)
    y = jax.block_until_ready(y)

    # Cross-check against a plain-JAX f32 reference (bf16 MXU operands -> looser tol).
    ref = jax.lax.conv_general_dilated(
        x, weight, window_strides=(stride, stride),
        padding=[(padding, padding), (padding, padding)],
        dimension_numbers=("NCHW", "OIHW", "NCHW"))
    scale = gamma / jnp.sqrt(running_var + 1e-5)
    bias = beta - running_mean * scale
    ref = ref * scale[None, :, None, None] + bias[None, :, None, None]
    ref = jnp.where(ref > 0, ref, 0.01 * ref)
    assert y.shape == (N, out_planes, H, W)
    assert jnp.allclose(y, ref, atol=2e-2, rtol=2e-2)

    print("KERNEL_OK")
</pallas_src>

<mosaic_0001>
module attributes {stable_mosaic.version = 11 : i64} {
  func.func @_conv_bn_lrelu_kernel(%arg0: i32, %arg1: memref<36x72xf32, #tpu.memory_space<vmem>>, %arg2: memref<3x72x128xbf16, #tpu.memory_space<vmem>>, %arg3: memref<1x128xf32, #tpu.memory_space<vmem>>, %arg4: memref<32x128xf32, #tpu.memory_space<vmem>>) attributes {dimension_semantics = [#tpu.dimension_semantics<arbitrary>], iteration_bounds = array<i64: 1>, scalar_prefetch = 0 : i64, scratch_operands = 0 : i64, tpu.core_type = #tpu.core_type<tc>, window_params = [{pipeline_mode = #tpu.pipeline_mode<synchronous>, transform_indices = @transform_0, window_bounds = array<i64: 36, 72>}, {pipeline_mode = #tpu.pipeline_mode<synchronous>, transform_indices = @transform_1, window_bounds = array<i64: 3, 72, 128>}, {pipeline_mode = #tpu.pipeline_mode<synchronous>, transform_indices = @transform_2, window_bounds = array<i64: 1, 128>}, {pipeline_mode = #tpu.pipeline_mode<synchronous>, transform_indices = @transform_3, window_bounds = array<i64: 32, 128>}]} {
    %cst = arith.constant 0.000000e+00 : f32
    %0 = vector.broadcast %cst : f32 to vector<32x128xf32>
    %c0 = arith.constant 0 : index
    %c0_0 = arith.constant 0 : index
    %1 = vector.load %arg1[%c0, %c0_0] : memref<36x72xf32, #tpu.memory_space<vmem>>, vector<16x72xf32>
    %c18 = arith.constant 18 : index
    %c0_1 = arith.constant 0 : index
    %2 = vector.load %arg1[%c18, %c0_1] : memref<36x72xf32, #tpu.memory_space<vmem>>, vector<16x72xf32>
    %3 = tpu.concatenate %1, %2 in 0 : vector<16x72xf32>, vector<16x72xf32> -> vector<32x72xf32>
    %4 = arith.truncf %3 : vector<32x72xf32> to vector<32x72xbf16>
    %c0_2 = arith.constant 0 : index
    %c0_3 = arith.constant 0 : index
    %c0_4 = arith.constant 0 : index
    %5 = vector.load %arg2[%c0_2, %c0_3, %c0_4] : memref<3x72x128xbf16, #tpu.memory_space<vmem>>, vector<1x72x128xbf16>
    %6 = vector.shape_cast %5 : vector<1x72x128xbf16> to vector<72x128xbf16>
    %cst_5 = arith.constant dense<0.000000e+00> : vector<32x128xf32>
    %7 = tpu.matmul %4, %6, %cst_5 {dimension_numbers = #tpu.dot_dimension_numbers<[1], [0], [0], [1], [0, 0, 1, 1], [], []>} : vector<32x72xbf16>, vector<72x128xbf16>, vector<32x128xf32> -> vector<32x128xf32>
    %8 = arith.addf %0, %7 : vector<32x128xf32>
    %c1 = arith.constant 1 : index
    %c0_6 = arith.constant 0 : index
    %9 = vector.load %arg1[%c1, %c0_6] : memref<36x72xf32, #tpu.memory_space<vmem>>, vector<16x72xf32>
    %c19 = arith.constant 19 : index
    %c0_7 = arith.constant 0 : index
    %10 = vector.load %arg1[%c19, %c0_7] : memref<36x72xf32, #tpu.memory_space<vmem>>, vector<16x72xf32>
    %11 = tpu.concatenate %9, %10 in 0 : vector<16x72xf32>, vector<16x72xf32> -> vector<32x72xf32>
    %12 = arith.truncf %11 : vector<32x72xf32> to vector<32x72xbf16>
    %c1_8 = arith.constant 1 : index
    %c0_9 = arith.constant 0 : index
    %c0_10 = arith.constant 0 : index
    %13 = vector.load %arg2[%c1_8, %c0_9, %c0_10] : memref<3x72x128xbf16, #tpu.memory_space<vmem>>, vector<1x72x128xbf16>
    %14 = vector.shape_cast %13 : vector<1x72x128xbf16> to vector<72x128xbf16>
    %cst_11 = arith.constant dense<0.000000e+00> : vector<32x128xf32>
    %15 = tpu.matmul %12, %14, %cst_11 {dimension_numbers = #tpu.dot_dimension_numbers<[1], [0], [0], [1], [0, 0, 1, 1], [], []>} : vector<32x72xbf16>, vector<72x128xbf16>, vector<32x128xf32> -> vector<32x128xf32>
    %16 = arith.addf %8, %15 : vector<32x128xf32>
    %c2 = arith.constant 2 : index
    %c0_12 = arith.constant 0 : index
    %17 = vector.load %arg1[%c2, %c0_12] : memref<36x72xf32, #tpu.memory_space<vmem>>, vector<16x72xf32>
    %c20 = arith.constant 20 : index
    %c0_13 = arith.constant 0 : index
    %18 = vector.load %arg1[%c20, %c0_13] : memref<36x72xf32, #tpu.memory_space<vmem>>, vector<16x72xf32>
    %19 = tpu.concatenate %17, %18 in 0 : vector<16x72xf32>, vector<16x72xf32> -> vector<32x72xf32>
    %20 = arith.truncf %19 : vector<32x72xf32> to vector<32x72xbf16>
    %c2_14 = arith.constant 2 : index
    %c0_15 = arith.constant 0 : index
    %c0_16 = arith.constant 0 : index
    %21 = vector.load %arg2[%c2_14, %c0_15, %c0_16] : memref<3x72x128xbf16, #tpu.memory_space<vmem>>, vector<1x72x128xbf16>
    %22 = vector.shape_cast %21 : vector<1x72x128xbf16> to vector<72x128xbf16>
    %cst_17 = arith.constant dense<0.000000e+00> : vector<32x128xf32>
    %23 = tpu.matmul %20, %22, %cst_17 {dimension_numbers = #tpu.dot_dimension_numbers<[1], [0], [0], [1], [0, 0, 1, 1], [], []>} : vector<32x72xbf16>, vector<72x128xbf16>, vector<32x128xf32> -> vector<32x128xf32>
    %24 = arith.addf %16, %23 : vector<32x128xf32>
    %c0_18 = arith.constant 0 : index
    %c0_19 = arith.constant 0 : index
    %25 = vector.load %arg3[%c0_18, %c0_19] : memref<1x128xf32, #tpu.memory_space<vmem>>, vector<1x128xf32>
    %26 = vector.broadcast %25 : vector<1x128xf32> to vector<32x128xf32>
    %27 = arith.addf %24, %26 : vector<32x128xf32>
    %cst_20 = arith.constant 0.000000e+00 : f32
    %28 = vector.broadcast %cst_20 : f32 to vector<32x128xf32>
    %29 = arith.cmpf ogt, %27, %28 : vector<32x128xf32>
    %cst_21 = arith.constant 0.00999999977 : f32
    %30 = vector.broadcast %cst_21 : f32 to vector<32x128xf32>
    %31 = arith.mulf %30, %27 : vector<32x128xf32>
    %32 = arith.select %29, %27, %31 : vector<32x128xi1>, vector<32x128xf32>
    %c0_22 = arith.constant 0 : index
    %c0_23 = arith.constant 0 : index
    %33 = vector.load %arg4[%c0_22, %c0_23] : memref<32x128xf32, #tpu.memory_space<vmem>>, vector<32x128xf32>
    tpu.vector_store %arg4[%c0_22, %c0_23], %32 {strides = array<i32>} : memref<32x128xf32, #tpu.memory_space<vmem>>, vector<32x128xf32>,
    return
  }
  func.func @transform_0(%arg0: i32) -> (i32, i32) {
    %c0_i32 = arith.constant 0 : i32
    %c0_i32_0 = arith.constant 0 : i32
    %c0_i32_1 = arith.constant 0 : i32
    return %c0_i32, %c0_i32_0 : i32, i32
  }
  func.func @transform_1(%arg0: i32) -> (i32, i32, i32) {
    %c0_i32 = arith.constant 0 : i32
    %c0_i32_0 = arith.constant 0 : i32
    %c0_i32_1 = arith.constant 0 : i32
    %c0_i32_2 = arith.constant 0 : i32
    return %c0_i32, %c0_i32_0, %c0_i32_1 : i32, i32, i32
  }
  func.func @transform_2(%arg0: i32) -> (i32, i32) {
    %c0_i32 = arith.constant 0 : i32
    %c0_i32_0 = arith.constant 0 : i32
    %c0_i32_1 = arith.constant 0 : i32
    return %c0_i32, %c0_i32_0 : i32, i32
  }
  func.func @transform_3(%arg0: i32) -> (i32, i32) {
    %c0_i32 = arith.constant 0 : i32
    %c0_i32_0 = arith.constant 0 : i32
    %c0_i32_1 = arith.constant 0 : i32
    return %c0_i32, %c0_i32_0 : i32, i32
  }
}

</mosaic_0001>

<llo_original>
// kernel: tile.8
$region0: #{tile.8}
  #allocation0 [shape = 's32[1]{0}', space=sflag, size = 0x4, scoped, tag = 'scoped memory for tile.8']
  %s0 = inlined_call_operand.vmem [shape: f32[8], index: 0, kind: input, shape index: {}]
  %s1 = inlined_call_operand.vmem [shape: f32[16,8], index: 1, kind: output, shape index: {}]
  // Predicated region
  $region2: #{tile.8} parent=0 // pred_check
    _
  $region3: #{tile.8} parent=0 // pred_check_branch
    %3 = sbr.rel (0) target = $region5
  $region4: #{tile.8} parent=0 // pred_region
    _
  $region5: #{tile.8} parent=0 // pred_fallthru
    _
  %v4 = vld [vmem:[%s0] ss:$0 sm:$0xff]
  %5 = vst [vmem:[%s1] sm:$0xff] %v4
  %s6 = scalar_lea.vmem %s1, 8
  %7 = vst [vmem:[%s6] sm:$0xff] %v4

// kernel: tile.9
$region0: #{tile.9}
  %s0 = inlined_call_operand.vmem [shape: f32[16,8], index: 0, kind: input, shape index: {}]
  %s1 = inlined_call_operand.vmem [shape: f32[1,128], index: 1, kind: output, shape index: {}]
  $region1: #{tile.9} parent=0
    #allocation0 [shape = 'u8[4096]{0}', space=vmem, size = 0x1000, scoped, tag = 'scoped mem for output reshape']
    %v2 = vld [vmem:[%s0] sm:$0x1]
    %vm3 = vcmask 64512
    %4 = vst.msk [vmem:[#allocation0] sm:$0x1] %vm3, %v2
    %s5 = scalar_lea.vmem %s0, 15
    %v6 = vld [vmem:[%s5] sm:$0x1]
    %7 = vrot.lane.b32.xlu0 %v6, 120
    %v8 = vpop.permute.xlu0 %7
    %vm9 = vcmask 1048512
    %10 = vst.msk [vmem:[#allocation0] sm:$0x1] %vm9, %v8
    %s11 = scalar_lea.vmem %s0, 14
    %v12 = vld [vmem:[%s11] sm:$0x1]
    %13 = vrot.lane.b32.xlu0 %v12, 112
    %v14 = vpop.permute.xlu0 %13
    %vm15 = vcmask 982912
    %16 = vst.msk [vmem:[#allocation0] sm:$0x1] %vm15, %v14
    %s17 = scalar_lea.vmem %s0, 13
    %v18 = vld [vmem:[%s17] sm:$0x1]
    %19 = vrot.lane.b32.xlu0 %v18, 104
    %v20 = vpop.permute.xlu0 %19
    %vm21 = vcmask 917312
    %22 = vst.msk [vmem:[#allocation0] sm:$0x1] %vm21, %v20
    %s23 = scalar_lea.vmem %s0, 12
    %v24 = vld [vmem:[%s23] sm:$0x1]
    %25 = vrot.lane.b32.xlu0 %v24, 96
    %v26 = vpop.permute.xlu0 %25
    %vm27 = vcmask 851712
    %28 = vst.msk [vmem:[#allocation0] sm:$0x1] %vm27, %v26
    %s29 = scalar_lea.vmem %s0, 11
    %v30 = vld [vmem:[%s29] sm:$0x1]
    %31 = vrot.lane.b32.xlu0 %v30, 88
    %v32 = vpop.permute.xlu0 %31
    %vm33 = vcmask 786112
    %34 = vst.msk [vmem:[#allocation0] sm:$0x1] %vm33, %v32
    %s35 = scalar_lea.vmem %s0, 10
    %v36 = vld [vmem:[%s35] sm:$0x1]
    %37 = vrot.lane.b32.xlu0 %v36, 80
    %v38 = vpop.permute.xlu0 %37
    %vm39 = vcmask 720512
    %40 = vst.msk [vmem:[#allocation0] sm:$0x1] %vm39, %v38
    %s41 = scalar_lea.vmem %s0, 9
    %v42 = vld [vmem:[%s41] sm:$0x1]
    %43 = vrot.lane.b32.xlu0 %v42, 72
    %v44 = vpop.permute.xlu0 %43
    %vm45 = vcmask 654912
    %46 = vst.msk [vmem:[#allocation0] sm:$0x1] %vm45, %v44
    %s47 = scalar_lea.vmem %s0, 8
    %v48 = vld [vmem:[%s47] sm:$0x1]
    %49 = vrot.lane.b32.xlu0 %v48, 64
    %v50 = vpop.permute.xlu0 %49
    %vm51 = vcmask 589312
    %52 = vst.msk [vmem:[#allocation0] sm:$0x1] %vm51, %v50
    %s53 = scalar_lea.vmem %s0, 7
    %v54 = vld [vmem:[%s53] sm:$0x1]
    %55 = vrot.lane.b32.xlu0 %v54, 56
    %v56 = vpop.permute.xlu0 %55
    %vm57 = vcmask 523712
    %58 = vst.msk [vmem:[#allocation0] sm:$0x1] %vm57, %v56
    %s59 = scalar_lea.vmem %s0, 6
    %v60 = vld [vmem:[%s59] sm:$0x1]
    %61 = vrot.lane.b32.xlu0 %v60, 48
    %v62 = vpop.permute.xlu0 %61
    %vm63 = vcmask 458112
    %64 = vst.msk [vmem:[#allocation0] sm:$0x1] %vm63, %v62
    %s65 = scalar_lea.vmem %s0, 5
    %v66 = vld [vmem:[%s65] sm:$0x1]
    %67 = vrot.lane.b32.xlu0 %v66, 40
    %v68 = vpop.permute.xlu0 %67
    %vm69 = vcmask 392512
    %70 = vst.msk [vmem:[#allocation0] sm:$0x1] %vm69, %v68
    %s71 = scalar_lea.vmem %s0, 4
    %v72 = vld [vmem:[%s71] sm:$0x1]
    %73 = vrot.lane.b32.xlu0 %v72, 32
    %v74 = vpop.permute.xlu0 %73
    %vm75 = vcmask 326912
    %76 = vst.msk [vmem:[#allocation0] sm:$0x1] %vm75, %v74
    %s77 = scalar_lea.vmem %s0, 3
    %v78 = vld [vmem:[%s77] sm:$0x1]
    %79 = vrot.lane.b32.xlu0 %v78, 24
    %v80 = vpop.permute.xlu0 %79
    %vm81 = vcmask 261312
    %82 = vst.msk [vmem:[#allocation0] sm:$0x1] %vm81, %v80
    %s83 = scalar_lea.vmem %s0, 2
    %v84 = vld [vmem:[%s83] sm:$0x1]
    %85 = vrot.lane.b32.xlu0 %v84, 16
    %v86 = vpop.permute.xlu0 %85
    %vm87 = vcmask 195712
    %88 = vst.msk [vmem:[#allocation0] sm:$0x1] %vm87, %v86
    %s89 = scalar_lea.vmem %s0, 1
    %v90 = vld [vmem:[%s89] sm:$0x1]
    %91 = vrot.lane.b32.xlu0 %v90, 8
    %v92 = vpop.permute.xlu0 %91
    %vm93 = vcmask 130112
    %94 = vst.msk [vmem:[#allocation0] sm:$0x1] %vm93, %v92
    %s96 = sshllo.u32 0, 1
    %v98 = vld [vmem:[#allocation0] sm:%s96]
    %s99 = sshllo.u32 0, 1
    %100 = vst [vmem:[%s1] sm:%s99] %v98

// kernel: conv_bn_lrelu.1
$region0: #{conv_bn_lrelu.1}
  #allocation0 [shape = 'u32[]', space=smem, size = 0x4, offset = 0x4, fixed_abs, tag = 'smem constant byte address 0x4 - core index']
  #allocation1 [shape = 'u32[144,128]{1,0:T(1,128)}', space=vmem, size = 0x12000, scoped, tag = 'internal scratch']
  %s0 = inlined_call_operand.vmem [shape: f32[36,72], index: 0, kind: input, shape index: {}]
  %s1 = inlined_call_operand.vmem [shape: bf16[3,72,128], index: 1, kind: input, shape index: {}]
  %s2 = inlined_call_operand.vmem [shape: f32[1,128], index: 2, kind: input, shape index: {}]
  %s3 = inlined_call_operand.vmem [shape: f32[32,128], index: 3, kind: output, shape index: {}]
  %s4 = sld [smem:[#allocation0]]
  $region22: #{conv_bn_lrelu.1} parent=0
    _
  %s6 = ssub.s32 1, %s4
  %s7 = scalar_select 0, %s6, %s4
  // Predicated region
  $region2: #{conv_bn_lrelu.1} parent=0 // pred_check
    _
  $region3: #{conv_bn_lrelu.1} parent=0 // pred_check_branch
    %9 = sbr.rel (0) target = $region5
  $region4: #{conv_bn_lrelu.1} parent=0 // pred_region
    _
  $region5: #{conv_bn_lrelu.1} parent=0 // pred_fallthru
    _
  // Predicated region
  $region6: #{conv_bn_lrelu.1} parent=0 // pred_check
    _
  $region7: #{conv_bn_lrelu.1} parent=0 // pred_check_branch
    %11 = sbr.rel (0) target = $region9
  $region8: #{conv_bn_lrelu.1} parent=0 // pred_region
    _
  $region9: #{conv_bn_lrelu.1} parent=0 // pred_fallthru
    _
  // Predicated region
  $region10: #{conv_bn_lrelu.1} parent=0 // pred_check
    _
  $region11: #{conv_bn_lrelu.1} parent=0 // pred_check_branch
    %13 = sbr.rel (0) target = $region13
  $region12: #{conv_bn_lrelu.1} parent=0 // pred_region
    _
  $region13: #{conv_bn_lrelu.1} parent=0 // pred_fallthru
    _
  %v15 = vld [vmem:[%s0] sm:$0xff]
  %v16 = vld [vmem:[%s0 + $0x8] sm:$0xff]
  %v17 = vld [vmem:[%s0 + $0x12] sm:$0xff]
  %v18 = vld [vmem:[%s0 + $0x1a] sm:$0xff]
  %v19 = vpack.c.bf16 %v16, %v15
  %v20 = vpack.c.bf16 %v18, %v17
  %v21 = vld [vmem:[%s1] sm:$0xf]
  %v22 = vld [vmem:[%s1 + $0x4] sm:$0xf]
  %v23 = vld [vmem:[%s1 + $0x8] sm:$0xf]
  %v24 = vld [vmem:[%s1 + $0xc] sm:$0xf]
  %v25 = vld [vmem:[%s1 + $0x10] sm:$0xf]
  %v26 = vld [vmem:[%s1 + $0x14] sm:$0xf]
  %v27 = vld [vmem:[%s1 + $0x18] sm:$0xf]
  %v28 = vld [vmem:[%s1 + $0x1c] sm:$0xf]
  %v29 = vld [vmem:[%s1 + $0x20] sm:$0xf]
  %v30 = vld [vmem:[%s0 + $0x1] sm:$0xff]
  %v31 = vld [vmem:[%s0 + $0x9] sm:$0xff]
  %v32 = vld [vmem:[%s0 + $0x13] sm:$0xff]
  %v33 = vld [vmem:[%s0 + $0x1b] sm:$0xff]
  %v34 = vpack.c.bf16 %v31, %v30
  %v35 = vpack.c.bf16 %v33, %v32
  %s36 = scalar_lea.vmem %s1, 36
  %v37 = vld [vmem:[%s36] sm:$0xf]
  %v38 = vld [vmem:[%s36 + $0x4] sm:$0xf]
  %v39 = vld [vmem:[%s36 + $0x8] sm:$0xf]
  %v40 = vld [vmem:[%s36 + $0xc] sm:$0xf]
  %v41 = vld [vmem:[%s36 + $0x10] sm:$0xf]
  %v42 = vld [vmem:[%s36 + $0x14] sm:$0xf]
  %v43 = vld [vmem:[%s36 + $0x18] sm:$0xf]
  %v44 = vld [vmem:[%s36 + $0x1c] sm:$0xf]
  %v45 = vld [vmem:[%s36 + $0x20] sm:$0xf]
  %v55 = vunpack.c.l.b16 %v37
  %v56 = vunpack.c.l.b16 %v38
  %v57 = vunpack.c.l.b16 %v39
  %v58 = vunpack.c.l.b16 %v40
  %v59 = vunpack.c.l.b16 %v41
  %v60 = vunpack.c.l.b16 %v42
  %v61 = vunpack.c.l.b16 %v43
  %v62 = vunpack.c.l.b16 %v44
  %v63 = vunpack.c.l.b16 %v45
  %v64 = vpack.c.b16 %v56, %v55
  %v65 = vpack.c.b16 %v58, %v57
  %v66 = vpack.c.b16 %v60, %v59
  %v67 = vpack.c.b16 %v62, %v61
  %v68 = vpack.c.b16 %v63, %v63
  %vm73 = vcmask 588800
  %v75 = vsel %vm73, %v34, 0
  %v78 = vsel %vm73, %v35, 0
  %vm80 = vcmask 1043456
  %v82 = vsel %vm80, %v68, 0
  %84 = vmatprep.subr.bf16.mxu0 0
  %85 = vmatpush1.bf16.msra.mxu0 %v64
  %86 = vmatprep.subr.bf16.mxu0 0
  %87 = vmatpush1.bf16.msra.mxu0 %v65
  %88 = vmatprep.subr.bf16.mxu0 0
  %89 = vmatpush1.bf16.msra.mxu0 %v66
  %90 = vmatprep.subr.bf16.mxu0 0
  %91 = vmatpush1.bf16.msra.mxu0 %v67
  %92 = vmatprep.subr.bf16.mxu0 0
  %93 = vmatpush1.bf16.msra.mxu0 %v82
  %94 = vmatprep.subr.bf16.mxu0 0
  %95 = vmatpush1.bf16.msra.mxu0 0
  %96 = vmatprep.subr.bf16.mxu0 0
  %97 = vmatpush1.bf16.msra.mxu0 0
  %98 = vmatprep.subr.bf16.mxu0 0
  %99 = vmatpush1.bf16.msra.mxu0 0
  %100 = vmatprep.subr.bf16.mxu0 0
  %101 = vmatpush1.bf16.msra.mxu0 0
  %102 = vmatprep.subr.bf16.mxu0 0
  %103 = vmatpush1.bf16.msra.mxu0 0
  %104 = vmatprep.subr.bf16.mxu0 0
  %105 = vmatpush1.bf16.msra.mxu0 0
  %106 = vmatprep.subr.bf16.mxu0 0
  %107 = vmatpush1.bf16.msra.mxu0 0
  %108 = vmatprep.subr.bf16.mxu0 0
  %109 = vmatpush1.bf16.msra.mxu0 0
  %110 = vmatprep.subr.bf16.mxu0 0
  %111 = vmatpush1.bf16.msra.mxu0 0
  %112 = vmatprep.subr.bf16.mxu0 0
  %113 = vmatpush1.bf16.msra.mxu0 0
  %114 = vmatprep.subr.bf16.mxu0 0
  %115 = vmatpush1.bf16.msra.mxu0 0
  %116 = vmatprep.mubr.bf16.mxu0 0
  %117 = vmatmul.mubr.bf16.gmra.mrb[0].mxu0 %v75
  %v118 = vpop.f32.mrb[0].mxu0
  %v119 = vadd.f32 0.0, %v118
  %v120 = vpop.f32.mrb[0].mxu0
  %v121 = vpop.f32.mrb[0].mxu0
  %v122 = vadd.f32 0.0, %v121
  %v123 = vpop.f32.mrb[0].mxu0
  %124 = vmatprep.mubr.bf16.mxu0 0
  %125 = vmatmul.mubr.bf16.gmra.mrb[0].mxu0 %v78
  %v126 = vpop.f32.mrb[0].mxu0
  %v127 = vadd.f32 0.0, %v126
  %v128 = vpop.f32.mrb[0].mxu0
  %v129 = vpop.f32.mrb[0].mxu0
  %v130 = vadd.f32 0.0, %v129
  %v131 = vpop.f32.mrb[0].mxu0
  %132 = vdwg.mxu0
  %v142 = vunpack.c.l.b16 %v21
  %v143 = vunpack.c.l.b16 %v22
  %v144 = vunpack.c.l.b16 %v23
  %v145 = vunpack.c.l.b16 %v24
  %v146 = vunpack.c.l.b16 %v25
  %v147 = vunpack.c.l.b16 %v26
  %v148 = vunpack.c.l.b16 %v27
  %v149 = vunpack.c.l.b16 %v28
  %v150 = vunpack.c.l.b16 %v29
  %v151 = vpack.c.b16 %v143, %v142
  %v152 = vpack.c.b16 %v145, %v144
  %v153 = vpack.c.b16 %v147, %v146
  %v154 = vpack.c.b16 %v149, %v148
  %v155 = vpack.c.b16 %v150, %v150
  %v161 = vsel %vm73, %v19, 0
  %v164 = vsel %vm73, %v20, 0
  %v167 = vsel %vm80, %v155, 0
  %169 = vmatprep.subr.bf16.mxu0 0
  %170 = vmatpush1.bf16.msra.mxu0 %v151
  %171 = vmatprep.subr.bf16.mxu0 0
  %172 = vmatpush1.bf16.msra.mxu0 %v152
  %173 = vmatprep.subr.bf16.mxu0 0
  %174 = vmatpush1.bf16.msra.mxu0 %v153
  %175 = vmatprep.subr.bf16.mxu0 0
  %176 = vmatpush1.bf16.msra.mxu0 %v154
  %177 = vmatprep.subr.bf16.mxu0 0
  %178 = vmatpush1.bf16.msra.mxu0 %v167
  %179 = vmatprep.subr.bf16.mxu0 0
  %180 = vmatpush1.bf16.msra.mxu0 0
  %181 = vmatprep.subr.bf16.mxu0 0
  %182 = vmatpush1.bf16.msra.mxu0 0
  %183 = vmatprep.subr.bf16.mxu0 0
  %184 = vmatpush1.bf16.msra.mxu0 0
  %185 = vmatprep.subr.bf16.mxu0 0
  %186 = vmatpush1.bf16.msra.mxu0 0
  %187 = vmatprep.subr.bf16.mxu0 0
  %188 = vmatpush1.bf16.msra.mxu0 0
  %189 = vmatprep.subr.bf16.mxu0 0
  %190 = vmatpush1.bf16.msra.mxu0 0
  %191 = vmatprep.subr.bf16.mxu0 0
  %192 = vmatpush1.bf16.msra.mxu0 0
  %193 = vmatprep.subr.bf16.mxu0 0
  %194 = vmatpush1.bf16.msra.mxu0 0
  %195 = vmatprep.subr.bf16.mxu0 0
  %196 = vmatpush1.bf16.msra.mxu0 0
  %197 = vmatprep.subr.bf16.mxu0 0
  %198 = vmatpush1.bf16.msra.mxu0 0
  %199 = vmatprep.subr.bf16.mxu0 0
  %200 = vmatpush1.bf16.msra.mxu0 0
  %201 = vmatprep.mubr.bf16.mxu0 0
  %202 = vmatmul.mubr.bf16.gmra.mrb[0].mxu0 %v161
  %v203 = vpop.f32.mrb[0].mxu0
  %v204 = vadd.f32 %v119, %v203
  %v205 = vpop.f32.mrb[0].mxu0
  %v206 = vpop.f32.mrb[0].mxu0
  %v207 = vadd.f32 %v122, %v206
  %v208 = vpop.f32.mrb[0].mxu0
  %209 = vmatprep.mubr.bf16.mxu0 0
  %210 = vmatmul.mubr.bf16.gmra.mrb[0].mxu0 %v164
  %v211 = vpop.f32.mrb[0].mxu0
  %v212 = vadd.f32 %v127, %v211
  %v213 = vpop.f32.mrb[0].mxu0
  %v214 = vpop.f32.mrb[0].mxu0
  %v215 = vadd.f32 %v130, %v214
  %v216 = vpop.f32.mrb[0].mxu0
  %217 = vdwg.mxu0
  %v218 = vld [vmem:[%s0 + $0x2] sm:$0xff]
  %v219 = vld [vmem:[%s0 + $0xa] sm:$0xff]
  %v220 = vld [vmem:[%s0 + $0x14] sm:$0xff]
  %v221 = vld [vmem:[%s0 + $0x1c] sm:$0xff]
  %v222 = vpack.c.bf16 %v219, %v218
  %v223 = vpack.c.bf16 %v221, %v220
  %s224 = scalar_lea.vmem %s1, 72
  %v225 = vld [vmem:[%s224] sm:$0xf]
  %v226 = vld [vmem:[%s224 + $0x4] sm:$0xf]
  %v227 = vld [vmem:[%s224 + $0x8] sm:$0xf]
  %v228 = vld [vmem:[%s224 + $0xc] sm:$0xf]
  %v229 = vld [vmem:[%s224 + $0x10] sm:$0xf]
  %v230 = vld [vmem:[%s224 + $0x14] sm:$0xf]
  %v231 = vld [vmem:[%s224 + $0x18] sm:$0xf]
  %v232 = vld [vmem:[%s224 + $0x1c] sm:$0xf]
  %v233 = vld [vmem:[%s224 + $0x20] sm:$0xf]
  %v243 = vunpack.c.l.b16 %v225
  %v244 = vunpack.c.l.b16 %v226
  %v245 = vunpack.c.l.b16 %v227
  %v246 = vunpack.c.l.b16 %v228
  %v247 = vunpack.c.l.b16 %v229
  %v248 = vunpack.c.l.b16 %v230
  %v249 = vunpack.c.l.b16 %v231
  %v250 = vunpack.c.l.b16 %v232
  %v251 = vunpack.c.l.b16 %v233
  %v252 = vpack.c.b16 %v244, %v243
  %v253 = vpack.c.b16 %v246, %v245
  %v254 = vpack.c.b16 %v248, %v247
  %v255 = vpack.c.b16 %v250, %v249
  %v256 = vpack.c.b16 %v251, %v251
  %v262 = vsel %vm73, %v222, 0
  %v265 = vsel %vm73, %v223, 0
  %v268 = vsel %vm80, %v256, 0
  %270 = vmatprep.subr.bf16.mxu0 0
  %271 = vmatpush1.bf16.msra.mxu0 %v252
  %272 = vmatprep.subr.bf16.mxu0 0
  %273 = vmatpush1.bf16.msra.mxu0 %v253
  %274 = vmatprep.subr.bf16.mxu0 0
  %275 = vmatpush1.bf16.msra.mxu0 %v254
  %276 = vmatprep.subr.bf16.mxu0 0
  %277 = vmatpush1.bf16.msra.mxu0 %v255
  %278 = vmatprep.subr.bf16.mxu0 0
  %279 = vmatpush1.bf16.msra.mxu0 %v268
  %280 = vmatprep.subr.bf16.mxu0 0
  %281 = vmatpush1.bf16.msra.mxu0 0
  %282 = vmatprep.subr.bf16.mxu0 0
  %283 = vmatpush1.bf16.msra.mxu0 0
  %284 = vmatprep.subr.bf16.mxu0 0
  %285 = vmatpush1.bf16.msra.mxu0 0
  %286 = vmatprep.subr.bf16.mxu0 0
  %287 = vmatpush1.bf16.msra.mxu0 0
  %288 = vmatprep.subr.bf16.mxu0 0
  %289 = vmatpush1.bf16.msra.mxu0 0
  %290 = vmatprep.subr.bf16.mxu0 0
  %291 = vmatpush1.bf16.msra.mxu0 0
  %292 = vmatprep.subr.bf16.mxu0 0
  %293 = vmatpush1.bf16.msra.mxu0 0
  %294 = vmatprep.subr.bf16.mxu0 0
  %295 = vmatpush1.bf16.msra.mxu0 0
  %296 = vmatprep.subr.bf16.mxu0 0
  %297 = vmatpush1.bf16.msra.mxu0 0
  %298 = vmatprep.subr.bf16.mxu0 0
  %299 = vmatpush1.bf16.msra.mxu0 0
  %300 = vmatprep.subr.bf16.mxu0 0
  %301 = vmatpush1.bf16.msra.mxu0 0
  %302 = vmatprep.mubr.bf16.mxu0 0
  %303 = vmatmul.mubr.bf16.gmra.mrb[0].mxu0 %v262
  %v304 = vpop.f32.mrb[0].mxu0
  %v305 = vadd.f32 0.0, %v304
  %v306 = vpop.f32.mrb[0].mxu0
  %v307 = vpop.f32.mrb[0].mxu0
  %v308 = vadd.f32 0.0, %v307
  %v309 = vpop.f32.mrb[0].mxu0
  %310 = vmatprep.mubr.bf16.mxu0 0
  %311 = vmatmul.mubr.bf16.gmra.mrb[0].mxu0 %v265
  %v312 = vpop.f32.mrb[0].mxu0
  %v313 = vadd.f32 0.0, %v312
  %v314 = vpop.f32.mrb[0].mxu0
  %v315 = vpop.f32.mrb[0].mxu0
  %v316 = vadd.f32 0.0, %v315
  %v317 = vpop.f32.mrb[0].mxu0
  %318 = vdwg.mxu0
  %v319 = vadd.f32 %v204, %v305
  %v320 = vadd.f32 %v207, %v308
  %v321 = vadd.f32 %v212, %v313
  %v322 = vadd.f32 %v215, %v316
  %v323 = vld [vmem:[%s2] sm:$0x1]
  %v325 = vlaneseq
  %v326 = vshrl.u32 %v325, 7
  %v327 = vsub.s32 0, %v326
  %v328 = vrot.slane %v323, %v327
  %v330 = vadd.f32 %v319, %v328
  %v331 = vadd.f32 %v320, %v328
  %v332 = vadd.f32 %v321, %v328
  %v333 = vadd.f32 %v322, %v328
  %vm334 = vcmp.gt.f32.partialorder %v330, 0.0
  %vm335 = vcmp.gt.f32.partialorder %v331, 0.0
  %vm336 = vcmp.gt.f32.partialorder %v332, 0.0
  %vm337 = vcmp.gt.f32.partialorder %v333, 0.0
  %v338 = vmul.f32 %v330, 0.01
  %v339 = vmul.f32 %v331, 0.01
  %v340 = vmul.f32 %v332, 0.01
  %v341 = vmul.f32 %v333, 0.01
  %v342 = vsel %vm334, %v330, %v338
  %v343 = vsel %vm335, %v331, %v339
  %v344 = vsel %vm336, %v332, %v340
  %v345 = vsel %vm337, %v333, %v341
  %346 = vst [vmem:[%s3] sm:$0xff] %v342
  %347 = vst [vmem:[%s3 + $0x8] sm:$0xff] %v343
  %348 = vst [vmem:[%s3 + $0x10] sm:$0xff] %v344
  %349 = vst [vmem:[%s3 + $0x18] sm:$0xff] %v345
  // Predicated region
  $region14: #{conv_bn_lrelu.1} parent=0 // pred_check
    _
  $region15: #{conv_bn_lrelu.1} parent=0 // pred_check_branch
    %351 = sbr.rel (0) target = $region17
  $region16: #{conv_bn_lrelu.1} parent=0 // pred_region
    _
  $region17: #{conv_bn_lrelu.1} parent=0 // pred_fallthru
    _
  // Predicated region
  $region18: #{conv_bn_lrelu.1} parent=0 // pred_check
    _
  $region19: #{conv_bn_lrelu.1} parent=0 // pred_check_branch
    %353 = sbr.rel (0) target = $region21
  $region20: #{conv_bn_lrelu.1} parent=0 // pred_region
    _
  $region21: #{conv_bn_lrelu.1} parent=0 // pred_fallthru
    _

</llo_original>
